<compile_context>
chip_gen: v5e
topology: v5e:2x2
jax: 0.10.0
libtpu: 0.0.40
codegen_flags: <defaults>
</compile_context>

<pallas_src>
import functools

import jax
import jax.numpy as jnp
from jax import lax
from jax.experimental import pallas as pl
from jax.experimental.pallas import tpu as pltpu

LANE = 128
NUM_CORES = 2                       # leading "parallel" axis (v7x megacore); harmless on 1-TC chips
_VMEM_LIMIT_BYTES = 32 * 1024 * 1024          # explicit scoped-VMEM request (v7x-safe: 64 MiB physical)
_STREAM_BUDGET_BYTES = 24 * 1024 * 1024       # total for 2x(enc tile + attn tile) double buffers
_SINGLE_BLOCK_BUDGET_BYTES = 16 * 1024 * 1024 # whole-array fast path threshold
_MAX_T_TILE = 2048


def _round_up(x, m):
    return -(-x // m) * m


def _enc_row_vmem_bytes(B, H, dtype):
    """VMEM bytes of one T-row of an enc block, including (sublane,128) padding."""
    bpe = jnp.dtype(dtype).itemsize
    sublane = 32 // bpe                      # f32->8, bf16->16 (packed sublanes)
    return _round_up(B, sublane) * _round_up(H, LANE) * bpe


def _attn_row_vmem_bytes(B):
    return _round_up(B, LANE) * 4            # attn tile is (t_tile, B) f32


def _fits_single_block(T, B, H, enc_dtype):
    per_row = _enc_row_vmem_bytes(B, H, enc_dtype) + _attn_row_vmem_bytes(B)
    return _round_up(T, 8) * per_row <= _SINGLE_BLOCK_BUDGET_BYTES


def _pick_t_tile(T, B, H, enc_dtype):
    """Largest multiple-of-8 T tile whose double-buffered enc+attn streams fit
    the stream budget (v7x-safe), capped at _MAX_T_TILE."""
    per_row = _enc_row_vmem_bytes(B, H, enc_dtype) + _attn_row_vmem_bytes(B)
    rows = _STREAM_BUDGET_BYTES // (2 * per_row)      # 2x: double buffering
    tile = min(_MAX_T_TILE, rows, _round_up(T, 8))
    return max(8, tile // 8 * 8)


# ----------------------------------------------------------------------------
# Kernels
# ----------------------------------------------------------------------------

def _mlp_softmax(context_f32, g_ref, w0c_ref, w0g_ref, b0_ref, w1_ref, b1_ref,
                 out_ref):
    """Shared finalize: h = tanh(ctx@W0c + g@W0g + b0); softmax(h@W1 + b1)."""
    mm = w0c_ref.dtype
    h = (jnp.dot(context_f32.astype(mm), w0c_ref[...],
                 preferred_element_type=jnp.float32)
         + jnp.dot(g_ref[...].astype(mm), w0g_ref[...],
                   preferred_element_type=jnp.float32)
         + b0_ref[...])
    h = jnp.tanh(h)                                   # activation_fn, f32
    logits = jnp.dot(h.astype(mm), w1_ref[...],
                     preferred_element_type=jnp.float32) + b1_ref[...]
    # Softmax over dim 1; padded columns carry bias -1e30 -> probability 0.
    m = jnp.max(logits, axis=1, keepdims=True)
    e = jnp.exp(logits - m)
    out_ref[...] = e / jnp.sum(e, axis=1, keepdims=True)   # exact divide (runs once)


def fused_decoder_kernel(enc_ref, attn_ref, g_ref, w0c_ref, w0g_ref, b0_ref,
                         w1_ref, b1_ref, out_ref):
    """Small-T fast path: whole arrays in VMEM, no grid, no scratch."""
    enc = enc_ref[...].astype(jnp.float32)                     # (T, B, H)
    w = attn_ref[...].astype(jnp.float32)[:, :, None]          # (T, B, 1)
    context = jnp.sum(w * enc, axis=0)                         # (B, H) f32, VPU adds
    _mlp_softmax(context, g_ref, w0c_ref, w0g_ref, b0_ref, w1_ref, b1_ref,
                 out_ref)


def context_partial_kernel(enc_ref, attn_ref, ctx_ref, *, t_tile,
                           tiles_per_core, seq_len):
    """Per-core partial context over a T range:
       ctx[c, b, h] += sum_t attn[t, b] * enc[t, b, h]  (ragged tail masked)."""
    c = pl.program_id(0)
    t = pl.program_id(1)

    @pl.when(t == 0)
    def _init():
        ctx_ref[...] = jnp.zeros_like(ctx_ref)

    base = (c * tiles_per_core + t) * t_tile
    rows = base + lax.broadcasted_iota(jnp.int32, (t_tile, 1, 1), 0)
    valid = rows < seq_len                                     # masks ragged/overrun tiles

    enc = enc_ref[...].astype(jnp.float32)                     # bf16 -> f32 upcast
    w = attn_ref[...].astype(jnp.float32)[:, :, None]          # (t_tile, B, 1)
    contrib = jnp.where(valid, w * enc, 0.0)                   # garbage rows -> 0
    ctx_ref[...] += jnp.sum(contrib, axis=0, keepdims=True)    # f32 accumulate


def finalize_kernel(ctx_ref, g_ref, w0c_ref, w0g_ref, b0_ref, w1_ref, b1_ref,
                    out_ref):
    """Combine per-core partial contexts and run the tiny MLP + softmax."""
    context = jnp.sum(ctx_ref[...], axis=0)                    # (B, H) f32
    _mlp_softmax(context, g_ref, w0c_ref, w0g_ref, b0_ref, w1_ref, b1_ref,
                 out_ref)


# ----------------------------------------------------------------------------
# Wrapper
# ----------------------------------------------------------------------------

@functools.partial(jax.jit, static_argnames=("p_out", "t_tile"))
def attn_decoder_forward(encoder_outputs, attn_weights, g, params, *, p_out,
                         t_tile=None):
    """encoder_outputs: (T, B, H), preferably bf16 via prepare_encoder_outputs;
    attn_weights: (B, 1, T) softmax'd; g: (B, V); params: prepared weights."""
    T, B, H = encoder_outputs.shape
    w0c, w0g, b0, w1, b1 = params
    p_pad = w1.shape[1]

    # Only the tiny attention tensor is re-laid-out: (B,1,T) -> (T,B).
    attn_tb = jnp.transpose(attn_weights[:, 0, :], (1, 0))

    weights = (g, w0c, w0g, b0, w1, b1)
    cp_nogrid = pltpu.CompilerParams(vmem_limit_bytes=_VMEM_LIMIT_BYTES)

    # ---- fast path: everything fits in one VMEM block ----------------------
    if t_tile is None and _fits_single_block(T, B, H, encoder_outputs.dtype):
        out_pad = pl.pallas_call(
            fused_decoder_kernel,
            out_shape=jax.ShapeDtypeStruct((B, p_pad), jnp.float32),
            compiler_params=cp_nogrid,
        )(encoder_outputs, attn_tb, *weights)
        return out_pad[:, :p_out]

    # ---- tiled path: dual-core T reduction + grid-less finalize ------------
    if t_tile is None:
        t_tile = _pick_t_tile(T, B, H, encoder_outputs.dtype)
    t_tile = max(8, min(t_tile, _round_up(T, 8)))
    n_tiles = pl.cdiv(T, t_tile)
    tiles_per_core = pl.cdiv(n_tiles, NUM_CORES)
    last_tile = n_tiles - 1

    # Clamp the block index for overrun tiles; the kernel mask zeroes their
    # contribution, so enc never needs HBM padding.
    def enc_map(c, t):
        return (jnp.minimum(c * tiles_per_core + t, last_tile), 0, 0)

    def attn_map(c, t):
        return (jnp.minimum(c * tiles_per_core + t, last_tile), 0)

    kernel = functools.partial(context_partial_kernel, t_tile=t_tile,
                               tiles_per_core=tiles_per_core, seq_len=T)

    ctx_partial = pl.pallas_call(
        kernel,
        out_shape=jax.ShapeDtypeStruct((NUM_CORES, B, H), jnp.float32),
        grid_spec=pltpu.PrefetchScalarGridSpec(
            num_scalar_prefetch=0,
            grid=(NUM_CORES, tiles_per_core),
            in_specs=[
                # Trailing dim is H; when H < 128 the VMEM tile is lane-padded
                # (accounted for in the budget). Production H should be a
                # multiple of 128 for full lane density.
                pl.BlockSpec((t_tile, B, H), enc_map),
                pl.BlockSpec((t_tile, B), attn_map),
            ],
            out_specs=pl.BlockSpec((1, B, H), lambda c, t: (c, 0, 0)),
        ),
        compiler_params=pltpu.CompilerParams(
            dimension_semantics=("parallel", "arbitrary"),
            vmem_limit_bytes=_VMEM_LIMIT_BYTES),
    )(encoder_outputs, attn_tb)

    out_pad = pl.pallas_call(
        finalize_kernel,
        out_shape=jax.ShapeDtypeStruct((B, p_pad), jnp.float32),
        compiler_params=cp_nogrid,
    )(ctx_partial, *weights)
    return out_pad[:, :p_out]


# ----------------------------------------------------------------------------
# Parameter / input preparation
# ----------------------------------------------------------------------------

def init_params(key, in_size, hid_size, out_size):
    k0, k1, k2, k3 = jax.random.split(key, 4)
    # nn.Linear-style init (uniform +/- 1/sqrt(fan_in)), deterministic.
    lim0 = 1.0 / (in_size ** 0.5)
    lim1 = 1.0 / (hid_size ** 0.5)
    w0 = jax.random.uniform(k0, (in_size, hid_size), jnp.float32, -lim0, lim0)
    b0 = jax.random.uniform(k1, (1, hid_size), jnp.float32, -lim0, lim0)
    w1 = jax.random.uniform(k2, (hid_size, out_size), jnp.float32, -lim1, lim1)
    b1 = jax.random.uniform(k3, (1, out_size), jnp.float32, -lim1, lim1)
    return w0, b0, w1, b1


def prepare_params(params, h_size, mm_dtype=jnp.bfloat16):
    """One-time prep: split w0 (removes the in-kernel concat), pad HID/P up to
    the 128-lane width (lane-dense output store), cast matmul weights to bf16.
    Padding is semantics-preserving: padded hidden units are tanh(0)=0 and
    padded output logits carry bias -1e30 -> softmax probability 0."""
    w0, b0, w1, b1 = params
    hid, p = w0.shape[1], w1.shape[1]
    hid_pad = _round_up(hid, LANE)
    p_pad = _round_up(p, LANE)

    w0c = jnp.pad(w0[:h_size, :], ((0, 0), (0, hid_pad - hid)))
    w0g = jnp.pad(w0[h_size:, :], ((0, 0), (0, hid_pad - hid)))
    b0p = jnp.pad(b0, ((0, 0), (0, hid_pad - hid)))
    w1p = jnp.pad(w1, ((0, hid_pad - hid), (0, p_pad - p)))
    b1p = jnp.pad(b1, ((0, 0), (0, p_pad - p)), constant_values=-1e30)

    return (w0c.astype(mm_dtype), w0g.astype(mm_dtype), b0p,
            w1p.astype(mm_dtype), b1p)


def prepare_encoder_outputs(encoder_outputs, dtype=jnp.bfloat16):
    """One-time cast of the encoder outputs (reused by every decode step):
    halves HBM traffic on the dominant stream; kernels upcast to f32."""
    return encoder_outputs.astype(dtype)


# ----------------------------------------------------------------------------
# Self-test
# ----------------------------------------------------------------------------

if __name__ == "__main__":
    # layer_dims = [H, HID, P], g_size = V  -> effective input = H + V
    B, T, H, V, HID, P = 8, 16, 32, 8, 64, 16

    key = jax.random.PRNGKey(0)
    k_enc, k_attn, k_g, k_par, k_enc2, k_attn2 = jax.random.split(key, 6)

    raw_params = init_params(k_par, H + V, HID, P)
    params = prepare_params(raw_params, H)
    w0, b0, w1, b1 = raw_params

    def reference(enc_f32, attn, g_):
        ctx = jnp.einsum("bt,tbh->bh", attn[:, 0, :], enc_f32)
        return jax.nn.softmax(
            jnp.tanh(jnp.concatenate([ctx, g_], 1) @ w0 + b0) @ w1 + b1, axis=1)

    g = jax.random.normal(k_g, (B, V), jnp.float32)

    # ---- case 1: small T -> fused single-block fast path --------------------
    enc = jax.random.normal(k_enc, (T, B, H), jnp.float32)
    attn = jax.nn.softmax(
        jax.random.normal(k_attn, (B, 1, T), jnp.float32), axis=-1)

    out = attn_decoder_forward(prepare_encoder_outputs(enc), attn, g, params,
                               p_out=P)
    out = jax.block_until_ready(out)
    assert out.shape == (B, P)
    assert bool(jnp.allclose(jnp.sum(out, axis=1), 1.0, atol=1e-3))
    # bf16 encoder stream + bf16 MXU operands => ~1e-3-level differences.
    assert bool(jnp.allclose(out, reference(enc, attn, g), atol=2.5e-2))

    # ---- case 2: longer ragged T -> tiled dual-core reduction path ---------
    T2 = 200                      # not a multiple of the tile -> exercises masking
    enc2 = jax.random.normal(k_enc2, (T2, B, H), jnp.float32)
    attn2 = jax.nn.softmax(
        jax.random.normal(k_attn2, (B, 1, T2), jnp.float32), axis=-1)

    out2 = attn_decoder_forward(prepare_encoder_outputs(enc2), attn2, g, params,
                                p_out=P, t_tile=64)
    out2 = jax.block_until_ready(out2)
    assert out2.shape == (B, P)
    assert bool(jnp.allclose(jnp.sum(out2, axis=1), 1.0, atol=1e-3))
    assert bool(jnp.allclose(out2, reference(enc2, attn2, g), atol=2.5e-2))

    print("KERNEL_OK")
</pallas_src>

<mosaic_0001>
module attributes {stable_mosaic.version = 11 : i64} {
  func.func @fused_decoder_kernel(%arg0: memref<16x8x32xbf16, #tpu.memory_space<vmem>>, %arg1: memref<16x8xf32, #tpu.memory_space<vmem>>, %arg2: memref<8x8xf32, #tpu.memory_space<vmem>>, %arg3: memref<32x128xbf16, #tpu.memory_space<vmem>>, %arg4: memref<8x128xbf16, #tpu.memory_space<vmem>>, %arg5: memref<1x128xf32, #tpu.memory_space<vmem>>, %arg6: memref<128x128xbf16, #tpu.memory_space<vmem>>, %arg7: memref<1x128xf32, #tpu.memory_space<vmem>>, %arg8: memref<8x128xf32, #tpu.memory_space<vmem>>) attributes {dimension_semantics = [], scalar_prefetch = 0 : i64, scratch_operands = 0 : i64, tpu.core_type = #tpu.core_type<tc>} {
    %c0 = arith.constant 0 : index
    %c0_0 = arith.constant 0 : index
    %c0_1 = arith.constant 0 : index
    %0 = vector.load %arg0[%c0, %c0_0, %c0_1] : memref<16x8x32xbf16, #tpu.memory_space<vmem>>, vector<16x8x32xbf16>
    %1 = arith.extf %0 : vector<16x8x32xbf16> to vector<16x8x32xf32>
    %c0_2 = arith.constant 0 : index
    %c0_3 = arith.constant 0 : index
    %2 = vector.load %arg1[%c0_2, %c0_3] : memref<16x8xf32, #tpu.memory_space<vmem>>, vector<16x8xf32>
    %3 = vector.shape_cast %2 : vector<16x8xf32> to vector<16x8x1xf32>
    %4 = vector.broadcast %3 : vector<16x8x1xf32> to vector<16x8x32xf32>
    %5 = arith.mulf %4, %1 : vector<16x8x32xf32>
    %cst = arith.constant dense<0.000000e+00> : vector<8x32xf32>
    %6 = vector.multi_reduction <add>, %5, %cst [0] : vector<16x8x32xf32> to vector<8x32xf32>
    %7 = arith.truncf %6 : vector<8x32xf32> to vector<8x32xbf16>
    %c0_4 = arith.constant 0 : index
    %c0_5 = arith.constant 0 : index
    %8 = vector.load %arg3[%c0_4, %c0_5] : memref<32x128xbf16, #tpu.memory_space<vmem>>, vector<32x128xbf16>
    %cst_6 = arith.constant dense<0.000000e+00> : vector<8x128xf32>
    %9 = tpu.matmul %7, %8, %cst_6 {dimension_numbers = #tpu.dot_dimension_numbers<[1], [0], [0], [1], [0, 0, 1, 1], [], []>} : vector<8x32xbf16>, vector<32x128xbf16>, vector<8x128xf32> -> vector<8x128xf32>
    %c0_7 = arith.constant 0 : index
    %c0_8 = arith.constant 0 : index
    %10 = vector.load %arg2[%c0_7, %c0_8] : memref<8x8xf32, #tpu.memory_space<vmem>>, vector<8x8xf32>
    %11 = arith.truncf %10 : vector<8x8xf32> to vector<8x8xbf16>
    %c0_9 = arith.constant 0 : index
    %c0_10 = arith.constant 0 : index
    %12 = vector.load %arg4[%c0_9, %c0_10] : memref<8x128xbf16, #tpu.memory_space<vmem>>, vector<8x128xbf16>
    %cst_11 = arith.constant dense<0.000000e+00> : vector<8x128xf32>
    %13 = tpu.matmul %11, %12, %cst_11 {dimension_numbers = #tpu.dot_dimension_numbers<[1], [0], [0], [1], [0, 0, 1, 1], [], []>} : vector<8x8xbf16>, vector<8x128xbf16>, vector<8x128xf32> -> vector<8x128xf32>
    %14 = arith.addf %9, %13 : vector<8x128xf32>
    %c0_12 = arith.constant 0 : index
    %c0_13 = arith.constant 0 : index
    %15 = vector.load %arg5[%c0_12, %c0_13] : memref<1x128xf32, #tpu.memory_space<vmem>>, vector<1x128xf32>
    %16 = vector.broadcast %15 : vector<1x128xf32> to vector<8x128xf32>
    %17 = arith.addf %14, %16 : vector<8x128xf32>
    %18 = math.tanh %17 : vector<8x128xf32>
    %19 = arith.truncf %18 : vector<8x128xf32> to vector<8x128xbf16>
    %c0_14 = arith.constant 0 : index
    %c0_15 = arith.constant 0 : index
    %20 = vector.load %arg6[%c0_14, %c0_15] : memref<128x128xbf16, #tpu.memory_space<vmem>>, vector<128x128xbf16>
    %cst_16 = arith.constant dense<0.000000e+00> : vector<8x128xf32>
    %21 = tpu.matmul %19, %20, %cst_16 {dimension_numbers = #tpu.dot_dimension_numbers<[1], [0], [0], [1], [0, 0, 1, 1], [], []>} : vector<8x128xbf16>, vector<128x128xbf16>, vector<8x128xf32> -> vector<8x128xf32>
    %c0_17 = arith.constant 0 : index
    %c0_18 = arith.constant 0 : index
    %22 = vector.load %arg7[%c0_17, %c0_18] : memref<1x128xf32, #tpu.memory_space<vmem>>, vector<1x128xf32>
    %23 = vector.broadcast %22 : vector<1x128xf32> to vector<8x128xf32>
    %24 = arith.addf %21, %23 : vector<8x128xf32>
    %cst_19 = arith.constant dense<0xFF800000> : vector<8xf32>
    %25 = vector.multi_reduction <maximumf>, %24, %cst_19 [1] : vector<8x128xf32> to vector<8xf32>
    %26 = vector.shape_cast %25 : vector<8xf32> to vector<8x1xf32>
    %27 = vector.broadcast %26 : vector<8x1xf32> to vector<8x128xf32>
    %28 = arith.subf %24, %27 : vector<8x128xf32>
    %29 = math.exp %28 : vector<8x128xf32>
    %cst_20 = arith.constant dense<0.000000e+00> : vector<8xf32>
    %30 = vector.multi_reduction <add>, %29, %cst_20 [1] : vector<8x128xf32> to vector<8xf32>
    %31 = vector.shape_cast %30 : vector<8xf32> to vector<8x1xf32>
    %32 = vector.broadcast %31 : vector<8x1xf32> to vector<8x128xf32>
    %33 = arith.divf %29, %32 : vector<8x128xf32>
    %c0_21 = arith.constant 0 : index
    %c0_22 = arith.constant 0 : index
    %34 = vector.load %arg8[%c0_21, %c0_22] : memref<8x128xf32, #tpu.memory_space<vmem>>, vector<8x128xf32>
    tpu.vector_store %arg8[%c0_21, %c0_22], %33 {strides = array<i32>} : memref<8x128xf32, #tpu.memory_space<vmem>>, vector<8x128xf32>,
    return
  }
}

</mosaic_0001>

<llo_original>
// kernel: attn_decoder_forward.1
$region0: #{attn_decoder_forward.1}
  #allocation0 [shape = 'u32[]', space=smem, size = 0x4, offset = 0x4, fixed_abs, tag = 'smem constant byte address 0x4 - core index']
  #allocation1 [shape = 'u32[72,128]{1,0:T(1,128)}', space=vmem, size = 0x9000, scoped, tag = 'internal scratch']
  %s0 = inlined_call_operand.hbm [shape: bf16[16,8,32], index: 0, kind: input, shape index: {}]
  %s1 = inlined_call_operand.vmem [shape: f32[16,8], index: 1, kind: input, shape index: {}]
  %s2 = inlined_call_operand.vmem [shape: f32[8,8], index: 2, kind: input, shape index: {}]
  %s3 = inlined_call_operand.vmem [shape: bf16[32,128], index: 3, kind: input, shape index: {}]
  %s4 = inlined_call_operand.vmem [shape: bf16[8,128], index: 4, kind: input, shape index: {}]
  %s5 = inlined_call_operand.vmem [shape: f32[1,128], index: 5, kind: input, shape index: {}]
  %s6 = inlined_call_operand.hbm [shape: bf16[128,128], index: 6, kind: input, shape index: {}]
  %s7 = inlined_call_operand.vmem [shape: f32[1,128], index: 7, kind: input, shape index: {}]
  %s8 = inlined_call_operand.hbm [shape: f32[8,128], index: 8, kind: output, shape index: {}]
  %s9 = sld [smem:[#allocation0]]
  $region50: #{attn_decoder_forward.1} parent=0
    _
  %s11 = ssub.s32 1, %s9
  %s12 = scalar_select 0, %s11, %s9
  $region1: #{attn_decoder_forward.1} parent=0
    #allocation2 [shape = 'u8[32768]{0}', space=vmem, size = 0x8000, scoped, tag = 'input window, operand 0, single buffered']
    #allocation3 [shape = 's32[1]{0}', space=sflag, size = 0x4, scoped, tag = 'scoped memory for attn_decoder_forward.1']
    #allocation4 [shape = 's32[1]{0}', space=sflag, size = 0x4, scoped, tag = 'scoped memory for attn_decoder_forward.1']
    #allocation5 [shape = 'u8[32768]{0}', space=vmem, size = 0x8000, scoped, tag = 'input window, operand 6, single buffered']
    #allocation6 [shape = 's32[1]{0}', space=sflag, size = 0x4, scoped, tag = 'scoped memory for attn_decoder_forward.1']
    #allocation7 [shape = 'u8[4096]{0}', space=vmem, size = 0x1000, scoped, tag = 'output window, operand 0, single buffered']
    %13 = vsyncpa [#allocation3], 0
    %14 = vsyncpa [#allocation6], 0
    %15 = vsyncpa [#allocation4], 0
    // Predicated region
    $region2: #{attn_decoder_forward.1} parent=1 // pred_check
      _
    $region3: #{attn_decoder_forward.1} parent=1 // pred_check_branch
      %17 = sbr.rel (0) target = $region5
    $region4: #{attn_decoder_forward.1} parent=1 // pred_region
      %19 = vsyncadd [#allocation3], 0
      %s20 = sshll.u32 %s0, 4
      %s21 = int_to_ptr.hbm [resolvable:$true] %s20
      %s22 = sshll.u32 [#allocation2], 4
      %s23 = int_to_ptr.vmem [resolvable:$true] %s22
      %28 = dma.hbm_to_vmem [thread:$0]  %s21, 1024, %s23, [#allocation3], 64, 64, 4
    $region5: #{attn_decoder_forward.1} parent=1 // pred_fallthru
      _
    // Predicated region
    $region6: #{attn_decoder_forward.1} parent=1 // pred_check
      _
    $region7: #{attn_decoder_forward.1} parent=1 // pred_check_branch
      %30 = sbr.rel (0) target = $region9
    $region8: #{attn_decoder_forward.1} parent=1 // pred_region
      _
    $region9: #{attn_decoder_forward.1} parent=1 // pred_fallthru
      _
    // Predicated region
    $region10: #{attn_decoder_forward.1} parent=1 // pred_check
      _
    $region11: #{attn_decoder_forward.1} parent=1 // pred_check_branch
      %32 = sbr.rel (0) target = $region13
    $region12: #{attn_decoder_forward.1} parent=1 // pred_region
      _
    $region13: #{attn_decoder_forward.1} parent=1 // pred_fallthru
      _
    // Predicated region
    $region14: #{attn_decoder_forward.1} parent=1 // pred_check
      _
    $region15: #{attn_decoder_forward.1} parent=1 // pred_check_branch
      %34 = sbr.rel (0) target = $region17
    $region16: #{attn_decoder_forward.1} parent=1 // pred_region
      _
    $region17: #{attn_decoder_forward.1} parent=1 // pred_fallthru
      _
    // Predicated region
    $region18: #{attn_decoder_forward.1} parent=1 // pred_check
      _
    $region19: #{attn_decoder_forward.1} parent=1 // pred_check_branch
      %36 = sbr.rel (0) target = $region21
    $region20: #{attn_decoder_forward.1} parent=1 // pred_region
      _
    $region21: #{attn_decoder_forward.1} parent=1 // pred_fallthru
      _
    // Predicated region
    $region22: #{attn_decoder_forward.1} parent=1 // pred_check
      _
    $region23: #{attn_decoder_forward.1} parent=1 // pred_check_branch
      %38 = sbr.rel (0) target = $region25
    $region24: #{attn_decoder_forward.1} parent=1 // pred_region
      _
    $region25: #{attn_decoder_forward.1} parent=1 // pred_fallthru
      _
    // Predicated region
    $region26: #{attn_decoder_forward.1} parent=1 // pred_check
      _
    $region27: #{attn_decoder_forward.1} parent=1 // pred_check_branch
      %40 = sbr.rel (0) target = $region29
    $region28: #{attn_decoder_forward.1} parent=1 // pred_region
      %42 = vsyncadd [#allocation6], 0
      %s43 = sshll.u32 %s6, 4
      %s44 = int_to_ptr.hbm [resolvable:$true] %s43
      %s45 = sshll.u32 [#allocation5], 4
      %s46 = int_to_ptr.vmem [resolvable:$true] %s45
      %51 = dma.hbm_to_vmem [thread:$0]  %s44, 1024, %s46, [#allocation6], 64, 64, 4
    $region29: #{attn_decoder_forward.1} parent=1 // pred_fallthru
      _
    // Predicated region
    $region30: #{attn_decoder_forward.1} parent=1 // pred_check
      _
    $region31: #{attn_decoder_forward.1} parent=1 // pred_check_branch
      %53 = sbr.rel (0) target = $region33
    $region32: #{attn_decoder_forward.1} parent=1 // pred_region
      _
    $region33: #{attn_decoder_forward.1} parent=1 // pred_fallthru
      _
    // Predicated region
    $region34: #{attn_decoder_forward.1} parent=1 // pred_check
      _
    $region35: #{attn_decoder_forward.1} parent=1 // pred_check_branch
      %55 = sbr.rel (0) target = $region37
    $region36: #{attn_decoder_forward.1} parent=1 // pred_region
      %57 = dma.done [#allocation3], 1024
    $region37: #{attn_decoder_forward.1} parent=1 // pred_fallthru
      _
    // Predicated region
    $region38: #{attn_decoder_forward.1} parent=1 // pred_check
      _
    $region39: #{attn_decoder_forward.1} parent=1 // pred_check_branch
      %59 = sbr.rel (0) target = $region41
    $region40: #{attn_decoder_forward.1} parent=1 // pred_region
      %61 = dma.done [#allocation6], 1024
    $region41: #{attn_decoder_forward.1} parent=1 // pred_fallthru
      _
    %v63 = vld [vmem:[#allocation2] sm:$0xf]
    %v64 = vld [vmem:[#allocation2 + $0x4] sm:$0xf]
    %v65 = vld [vmem:[#allocation2 + $0x8] sm:$0xf]
    %v66 = vld [vmem:[#allocation2 + $0xc] sm:$0xf]
    %v67 = vld [vmem:[#allocation2 + $0x10] sm:$0xf]
    %v68 = vld [vmem:[#allocation2 + $0x14] sm:$0xf]
    %v69 = vld [vmem:[#allocation2 + $0x18] sm:$0xf]
    %v70 = vld [vmem:[#allocation2 + $0x1c] sm:$0xf]
    %v71 = vld [vmem:[#allocation2 + $0x20] sm:$0xf]
    %v72 = vld [vmem:[#allocation2 + $0x24] sm:$0xf]
    %v73 = vld [vmem:[#allocation2 + $0x28] sm:$0xf]
    %v74 = vld [vmem:[#allocation2 + $0x2c] sm:$0xf]
    %v75 = vld [vmem:[#allocation2 + $0x30] sm:$0xf]
    %v76 = vld [vmem:[#allocation2 + $0x34] sm:$0xf]
    %v77 = vld [vmem:[#allocation2 + $0x38] sm:$0xf]
    %v78 = vld [vmem:[#allocation2 + $0x3c] sm:$0xf]
    %v79 = vunpack.c.l.bf16 %v63
    %v80 = vunpack.c.l.bf16 %v64
    %v81 = vunpack.c.l.bf16 %v65
    %v82 = vunpack.c.l.bf16 %v66
    %v83 = vunpack.c.l.bf16 %v67
    %v84 = vunpack.c.l.bf16 %v68
    %v85 = vunpack.c.l.bf16 %v69
    %v86 = vunpack.c.l.bf16 %v70
    %v87 = vunpack.c.l.bf16 %v71
    %v88 = vunpack.c.l.bf16 %v72
    %v89 = vunpack.c.l.bf16 %v73
    %v90 = vunpack.c.l.bf16 %v74
    %v91 = vunpack.c.l.bf16 %v75
    %v92 = vunpack.c.l.bf16 %v76
    %v93 = vunpack.c.l.bf16 %v77
    %v94 = vunpack.c.l.bf16 %v78
    %v95 = vld [vmem:[%s1] sm:$0xff]
    %v96 = vld [vmem:[%s1 + $0x8] sm:$0xff]
    %v97 = vperm.slane %v95, 0
    %v98 = vlaneseq
    %v99 = vshrl.u32 %v98, 7
    %101 = vset.pattern.permute.xlu0 %v99
    %102 = vperm.xlu0 %101, %v97
    %v103 = vpop.permute.xlu0 %102
    %v104 = vperm.slane %v95, 1
    %v105 = vlaneseq
    %v106 = vshrl.u32 %v105, 7
    %108 = vset.pattern.permute.xlu0 %v106
    %109 = vperm.xlu0 %108, %v104
    %v110 = vpop.permute.xlu0 %109
    %v111 = vperm.slane %v95, 2
    %v112 = vlaneseq
    %v113 = vshrl.u32 %v112, 7
    %115 = vset.pattern.permute.xlu0 %v113
    %116 = vperm.xlu0 %115, %v111
    %v117 = vpop.permute.xlu0 %116
    %v118 = vperm.slane %v95, 3
    %v119 = vlaneseq
    %v120 = vshrl.u32 %v119, 7
    %122 = vset.pattern.permute.xlu0 %v120
    %123 = vperm.xlu0 %122, %v118
    %v124 = vpop.permute.xlu0 %123
    %v125 = vperm.slane %v95, 4
    %v126 = vlaneseq
    %v127 = vshrl.u32 %v126, 7
    %129 = vset.pattern.permute.xlu0 %v127
    %130 = vperm.xlu0 %129, %v125
    %v131 = vpop.permute.xlu0 %130
    %v132 = vperm.slane %v95, 5
    %v133 = vlaneseq
    %v134 = vshrl.u32 %v133, 7
    %136 = vset.pattern.permute.xlu0 %v134
    %137 = vperm.xlu0 %136, %v132
    %v138 = vpop.permute.xlu0 %137
    %v139 = vperm.slane %v95, 6
    %v140 = vlaneseq
    %v141 = vshrl.u32 %v140, 7
    %143 = vset.pattern.permute.xlu0 %v141
    %144 = vperm.xlu0 %143, %v139
    %v145 = vpop.permute.xlu0 %144
    %v146 = vperm.slane %v95, 7
    %v147 = vlaneseq
    %v148 = vshrl.u32 %v147, 7
    %150 = vset.pattern.permute.xlu0 %v148
    %151 = vperm.xlu0 %150, %v146
    %v152 = vpop.permute.xlu0 %151
    %v153 = vperm.slane %v96, 0
    %v154 = vlaneseq
    %v155 = vshrl.u32 %v154, 7
    %157 = vset.pattern.permute.xlu0 %v155
    %158 = vperm.xlu0 %157, %v153
    %v159 = vpop.permute.xlu0 %158
    %v160 = vperm.slane %v96, 1
    %v161 = vlaneseq
    %v162 = vshrl.u32 %v161, 7
    %164 = vset.pattern.permute.xlu0 %v162
    %165 = vperm.xlu0 %164, %v160
    %v166 = vpop.permute.xlu0 %165
    %v167 = vperm.slane %v96, 2
    %v168 = vlaneseq
    %v169 = vshrl.u32 %v168, 7
    %171 = vset.pattern.permute.xlu0 %v169
    %172 = vperm.xlu0 %171, %v167
    %v173 = vpop.permute.xlu0 %172
    %v174 = vperm.slane %v96, 3
    %v175 = vlaneseq
    %v176 = vshrl.u32 %v175, 7
    %178 = vset.pattern.permute.xlu0 %v176
    %179 = vperm.xlu0 %178, %v174
    %v180 = vpop.permute.xlu0 %179
    %v181 = vperm.slane %v96, 4
    %v182 = vlaneseq
    %v183 = vshrl.u32 %v182, 7
    %185 = vset.pattern.permute.xlu0 %v183
    %186 = vperm.xlu0 %185, %v181
    %v187 = vpop.permute.xlu0 %186
    %v188 = vperm.slane %v96, 5
    %v189 = vlaneseq
    %v190 = vshrl.u32 %v189, 7
    %192 = vset.pattern.permute.xlu0 %v190
    %193 = vperm.xlu0 %192, %v188
    %v194 = vpop.permute.xlu0 %193
    %v195 = vperm.slane %v96, 6
    %v196 = vlaneseq
    %v197 = vshrl.u32 %v196, 7
    %199 = vset.pattern.permute.xlu0 %v197
    %200 = vperm.xlu0 %199, %v195
    %v201 = vpop.permute.xlu0 %200
    %v202 = vperm.slane %v96, 7
    %v203 = vlaneseq
    %v204 = vshrl.u32 %v203, 7
    %206 = vset.pattern.permute.xlu0 %v204
    %207 = vperm.xlu0 %206, %v202
    %v208 = vpop.permute.xlu0 %207
    %v209 = vmul.f32 %v103, %v79
    %v210 = vmul.f32 %v110, %v80
    %v211 = vmul.f32 %v117, %v81
    %v212 = vmul.f32 %v124, %v82
    %v213 = vmul.f32 %v131, %v83
    %v214 = vmul.f32 %v138, %v84
    %v215 = vmul.f32 %v145, %v85
    %v216 = vmul.f32 %v152, %v86
    %v217 = vmul.f32 %v159, %v87
    %v218 = vmul.f32 %v166, %v88
    %v219 = vmul.f32 %v173, %v89
    %v220 = vmul.f32 %v180, %v90
    %v221 = vmul.f32 %v187, %v91
    %v222 = vmul.f32 %v194, %v92
    %v223 = vmul.f32 %v201, %v93
    %v224 = vmul.f32 %v208, %v94
    %vm225 = vcmask 261120
    %v226 = vsel %vm225, %v209, 0.0
    %v227 = vsel %vm225, %v210, 0.0
    %v228 = vadd.f32 %v226, %v227
    %v229 = vsel %vm225, %v211, 0.0
    %v230 = vadd.f32 %v228, %v229
    %v231 = vsel %vm225, %v212, 0.0
    %v232 = vadd.f32 %v230, %v231
    %v233 = vsel %vm225, %v213, 0.0
    %v234 = vadd.f32 %v232, %v233
    %v235 = vsel %vm225, %v214, 0.0
    %v236 = vadd.f32 %v234, %v235
    %v237 = vsel %vm225, %v215, 0.0
    %v238 = vadd.f32 %v236, %v237
    %v239 = vsel %vm225, %v216, 0.0
    %v240 = vadd.f32 %v238, %v239
    %v241 = vsel %vm225, %v217, 0.0
    %v242 = vadd.f32 %v240, %v241
    %v243 = vsel %vm225, %v218, 0.0
    %v244 = vadd.f32 %v242, %v243
    %v245 = vsel %vm225, %v219, 0.0
    %v246 = vadd.f32 %v244, %v245
    %v247 = vsel %vm225, %v220, 0.0
    %v248 = vadd.f32 %v246, %v247
    %v249 = vsel %vm225, %v221, 0.0
    %v250 = vadd.f32 %v248, %v249
    %v251 = vsel %vm225, %v222, 0.0
    %v252 = vadd.f32 %v250, %v251
    %v253 = vsel %vm225, %v223, 0.0
    %v254 = vadd.f32 %v252, %v253
    %v255 = vsel %vm225, %v224, 0.0
    %v256 = vadd.f32 %v254, %v255
    %v257 = vpack.c.bf16 %v256, %v256
    %v258 = vld [vmem:[%s3] sm:$0xf]
    %v259 = vld [vmem:[%s3 + $0x4] sm:$0xf]
    %v260 = vld [vmem:[%s3 + $0x8] sm:$0xf]
    %v261 = vld [vmem:[%s3 + $0xc] sm:$0xf]
    %v262 = vld [vmem:[%s2] sm:$0xff]
    %v263 = vpack.c.bf16 %v262, %v262
    %v264 = vld [vmem:[%s4] sm:$0xf]
    %vm265 = vcmask 64512
    %v267 = vsel %vm265, %v263, 0
    %vm269 = vcmask 1043456
    %v271 = vsel %vm269, %v264, 0
    %273 = vmatpush.bf16.msra.mxu0 0
    %274 = vmatpush.bf16.msra.mxu0 0
    %275 = vmatpush.bf16.msra.mxu0 0
    %276 = vmatpush.bf16.msra.mxu0 0
    %277 = vmatpush.bf16.msra.mxu0 0
    %278 = vmatpush.bf16.msra.mxu0 0
    %279 = vmatpush.bf16.msra.mxu0 0
    %280 = vmatpush.bf16.msra.mxu0 %v271
    %281 = vmatmul.bf16.gmra.mxu0 %v267
    %v282 = vpop.f32.mrf.mxu0
    %v283 = vadd.f32 0.0, %v282
    %v284 = vpop.f32.mrf.mxu0
    %285 = vdwg.mxu0
    %v290 = vunpack.c.l.b16 %v258
    %v291 = vunpack.c.l.b16 %v259
    %v292 = vunpack.c.l.b16 %v260
    %v293 = vunpack.c.l.b16 %v261
    %v294 = vpack.c.b16 %v291, %v290
    %v295 = vpack.c.b16 %v293, %v292
    %v299 = vsel %vm225, %v257, 0
    %301 = vmatpush.bf16.msra.mxu0 0
    %302 = vmatpush.bf16.msra.mxu0 0
    %303 = vmatpush.bf16.msra.mxu0 0
    %304 = vmatpush.bf16.msra.mxu0 0
    %305 = vmatpush.bf16.msra.mxu0 0
    %306 = vmatpush.bf16.msra.mxu0 0
    %307 = vmatpush.bf16.msra.mxu0 %v295
    %308 = vmatpush.bf16.msra.mxu0 %v294
    %309 = vmatmul.bf16.gmra.mxu0 %v299
    %v310 = vpop.f32.mrf.mxu0
    %v311 = vadd.f32 %v283, %v310
    %v312 = vpop.f32.mrf.mxu0
    %313 = vdwg.mxu0
    %v314 = vld [vmem:[%s5] sm:$0x1]
    %v316 = vperm.slane %v314, 0
    %v318 = vadd.f32 %v311, %v316
    %v319 = vtanh.pop %v318
    %v320 = vpack.c.bf16 %v319, %v319
    %v321 = vld [vmem:[#allocation5] sm:$0xf]
    %v322 = vld [vmem:[#allocation5 + $0x4] sm:$0xf]
    %v323 = vld [vmem:[#allocation5 + $0x8] sm:$0xf]
    %v324 = vld [vmem:[#allocation5 + $0xc] sm:$0xf]
    %v325 = vld [vmem:[#allocation5 + $0x10] sm:$0xf]
    %v326 = vld [vmem:[#allocation5 + $0x14] sm:$0xf]
    %v327 = vld [vmem:[#allocation5 + $0x18] sm:$0xf]
    %v328 = vld [vmem:[#allocation5 + $0x1c] sm:$0xf]
    %v329 = vld [vmem:[#allocation5 + $0x20] sm:$0xf]
    %v330 = vld [vmem:[#allocation5 + $0x24] sm:$0xf]
    %v331 = vld [vmem:[#allocation5 + $0x28] sm:$0xf]
    %v332 = vld [vmem:[#allocation5 + $0x2c] sm:$0xf]
    %v333 = vld [vmem:[#allocation5 + $0x30] sm:$0xf]
    %v334 = vld [vmem:[#allocation5 + $0x34] sm:$0xf]
    %v335 = vld [vmem:[#allocation5 + $0x38] sm:$0xf]
    %v336 = vld [vmem:[#allocation5 + $0x3c] sm:$0xf]
    %v337 = vld [vmem:[%s7] sm:$0x1]
    %v339 = vperm.slane %v337, 0
    %v357 = vunpack.c.l.b16 %v321
    %v358 = vunpack.c.l.b16 %v322
    %v359 = vunpack.c.l.b16 %v323
    %v360 = vunpack.c.l.b16 %v324
    %v361 = vunpack.c.l.b16 %v325
    %v362 = vunpack.c.l.b16 %v326
    %v363 = vunpack.c.l.b16 %v327
    %v364 = vunpack.c.l.b16 %v328
    %v365 = vunpack.c.l.b16 %v329
    %v366 = vunpack.c.l.b16 %v330
    %v367 = vunpack.c.l.b16 %v331
    %v368 = vunpack.c.l.b16 %v332
    %v369 = vunpack.c.l.b16 %v333
    %v370 = vunpack.c.l.b16 %v334
    %v371 = vunpack.c.l.b16 %v335
    %v372 = vunpack.c.l.b16 %v336
    %v373 = vpack.c.b16 %v358, %v357
    %v374 = vpack.c.b16 %v360, %v359
    %v375 = vpack.c.b16 %v362, %v361
    %v376 = vpack.c.b16 %v364, %v363
    %v377 = vpack.c.b16 %v366, %v365
    %v378 = vpack.c.b16 %v368, %v367
    %v379 = vpack.c.b16 %v370, %v369
    %v380 = vpack.c.b16 %v372, %v371
    %389 = vmatpush.bf16.msra.mxu0 %v380
    %390 = vmatpush.bf16.msra.mxu0 %v379
    %391 = vmatpush.bf16.msra.mxu0 %v378
    %392 = vmatpush.bf16.msra.mxu0 %v377
    %393 = vmatpush.bf16.msra.mxu0 %v376
    %394 = vmatpush.bf16.msra.mxu0 %v375
    %395 = vmatpush.bf16.msra.mxu0 %v374
    %396 = vmatpush.bf16.msra.mxu0 %v373
    %397 = vmatmul.bf16.gmra.mxu0 %v320
    %v398 = vpop.f32.mrf.mxu0
    %v399 = vadd.f32 %v339, %v398
    %v400 = vpop.f32.mrf.mxu0
    %401 = vdwg.mxu0
    %402 = vmax.xlane.f32.xlu0 %v399
    %v403 = vpop.xlane.xlu0 %402
    %v404 = vsub.f32 %v399, %v403
    %v405 = vmul.f32 %v404, 1.442695
    %v406 = vpow.pop %v405
    %407 = vadd.xlane.f32.xlu0 %v406
    %v408 = vpop.xlane.xlu0 %407
    %v409 = vrcp.pop %v408
    %v410 = vmul.f32 %v408, %v409
    %v411 = vsub.f32 1.0, %v410
    %v412 = vmul.f32 %v409, %v411
    %v413 = vadd.f32 %v409, %v412
    %vm414 = vweird.f32 %v408
    %vm415 = vweird.f32 %v409
    %vm416 = vmor %vm414, %vm415
    %v417 = vsel %vm416, %v409, %v413
    %v418 = vand.u32 2147483647, %v408
    %vm419 = vcmp.eq.f32.partialorder %v418, 8.507059e+37
    %v420 = vand.u32 %v408, 2147483648
    %v421 = vor.u32 1.1754944e-38, %v420
    %v422 = vsel %vm419, %v421, %v417
    %v423 = vmul.f32 %v406, %v422
    %424 = vst [vmem:[#allocation7] sm:$0xff] %v423
    // Predicated region
    $region42: #{attn_decoder_forward.1} parent=1 // pred_check
      _
    $region43: #{attn_decoder_forward.1} parent=1 // pred_check_branch
      %426 = sbr.rel (0) target = $region45
    $region44: #{attn_decoder_forward.1} parent=1 // pred_region
      %428 = vsyncadd [#allocation4], 0
      %s430 = sshll.u32 [#allocation7], 4
      %s431 = int_to_ptr.vmem [resolvable:$true] %s430
      %s432 = sshll.u32 %s8, 4
      %s433 = int_to_ptr.hbm [resolvable:$true] %s432
      %435 = dma.vmem_to_hbm [thread:$0]  %s431, 128, %s433, [#allocation4]
    $region45: #{attn_decoder_forward.1} parent=1 // pred_fallthru
      _
    // Predicated region
    $region46: #{attn_decoder_forward.1} parent=1 // pred_check
      _
    $region47: #{attn_decoder_forward.1} parent=1 // pred_check_branch
      %437 = sbr.rel (0) target = $region49
    $region48: #{attn_decoder_forward.1} parent=1 // pred_region
      %439 = dma.done [#allocation4], 128
    $region49: #{attn_decoder_forward.1} parent=1 // pred_fallthru
      _
    %440 = vsyncpa [#allocation3], 1
    %441 = vsyncpa [#allocation6], 1
    %442 = vsyncpa [#allocation4], 1

</llo_original>
